<compile_context>
chip_gen: v7x
topology: tpu7x:2x2x1
jax: 0.10.0
libtpu: 0.0.40
codegen_flags: <defaults>
</compile_context>

<pallas_src>
import functools

import jax
import jax.numpy as jnp
from jax.experimental import pallas as pl
from jax.experimental.pallas import tpu as pltpu

EPS = 1e-5
NEG_SLOPE = 0.01  # torch.nn.LeakyReLU default


def _round_up(n, m):
    return -(-n // m) * m


def _leaky_relu(x):
    return jnp.where(x >= 0, x, NEG_SLOPE * x)


def critic_kernel(x_ref, p_ref, o_ref, *, S, H, S_pad, H_pad):
    # p_ref row layout (all starts are multiples of 8 -> aligned slices):
    #   [0        : S       ]  w1            (S, H)
    #   [S_pad    : S_pad+H ]  w2            (H, H)
    #   [S_pad+H_pad + r    ]  r=0:g1 1:be1 2:g2 3:be2 4:w3_row 5:b3 6/7:pad
    off_w2 = S_pad
    off_v = S_pad + H_pad

    x = x_ref[...]
    inv_b = 1.0 / x.shape[0]

    # ---- Layer 1: Linear (bias cancelled by training-mode BN) + BN + LeakyReLU
    h = jnp.dot(x, p_ref[0:S, :], preferred_element_type=jnp.float32)
    s1 = jnp.sum(h, axis=0, keepdims=True) * inv_b            # mean
    s2 = jnp.sum(h * h, axis=0, keepdims=True) * inv_b        # E[h^2]
    var = s2 - s1 * s1                                        # biased var
    scale = p_ref[off_v + 0:off_v + 1, :] * jax.lax.rsqrt(var + EPS)
    shift = p_ref[off_v + 1:off_v + 2, :] - s1 * scale
    h = _leaky_relu(h * scale + shift)

    # ---- Layer 2: Linear + BN + LeakyReLU
    h = jnp.dot(h, p_ref[off_w2:off_w2 + H, :],
                preferred_element_type=jnp.float32)
    s1 = jnp.sum(h, axis=0, keepdims=True) * inv_b
    s2 = jnp.sum(h * h, axis=0, keepdims=True) * inv_b
    var = s2 - s1 * s1
    scale = p_ref[off_v + 2:off_v + 3, :] * jax.lax.rsqrt(var + EPS)
    shift = p_ref[off_v + 3:off_v + 4, :] - s1 * scale
    h = _leaky_relu(h * scale + shift)

    # ---- Layer 3: Linear(H -> 1) as VPU multiply + lane reduce (no MXU pass)
    out = (jnp.sum(h * p_ref[off_v + 4:off_v + 5, :], axis=-1, keepdims=True)
           + p_ref[off_v + 5:off_v + 6, 0:1])
    o_ref[...] = out.astype(o_ref.dtype)


def pack_params(p, state_size, hidden_size):
    """Pack w1, w2 and the nine tiny vectors into one sublane-aligned slab."""
    H = hidden_size
    S_pad = _round_up(state_size, 8)
    H_pad = _round_up(hidden_size, 8)

    w1 = p["w1"]
    if S_pad > state_size:
        w1 = jnp.concatenate(
            [w1, jnp.zeros((S_pad - state_size, H), jnp.float32)], axis=0)
    w2 = p["w2"]
    if H_pad > hidden_size:
        w2 = jnp.concatenate(
            [w2, jnp.zeros((H_pad - hidden_size, H), jnp.float32)], axis=0)

    w3_row = p["w3"][:, 0].reshape(1, H)
    b3_row = jnp.full((1, H), p["b3"][0, 0], jnp.float32)
    pad = jnp.zeros((2, H), jnp.float32)
    return jnp.concatenate(
        [w1, w2, p["g1"], p["be1"], p["g2"], p["be2"], w3_row, b3_row, pad],
        axis=0)


def model_critic_forward(x, params):
    """x: (B, state_size) float32; params: dict of weights. Returns (B, 1)."""
    B, S = x.shape
    H = params["w1"].shape[1]
    S_pad = _round_up(S, 8)
    H_pad = _round_up(H, 8)
    slab = pack_params(params, S, H)
    kernel = functools.partial(critic_kernel, S=S, H=H, S_pad=S_pad, H_pad=H_pad)
    # Tiny problem: everything resident in VMEM, single invocation, no grid.
    return pl.pallas_call(
        kernel,
        out_shape=jax.ShapeDtypeStruct((B, 1), jnp.float32),
        in_specs=[pl.BlockSpec(memory_space=pltpu.MemorySpace.VMEM)] * 2,
        out_specs=pl.BlockSpec(memory_space=pltpu.MemorySpace.VMEM),
    )(x, slab)


def init_params(key, state_size, hidden_size):
    """Deterministic synthetic parameter init (shapes match the torch module)."""
    ks = jax.random.split(key, 6)
    scale1 = 1.0 / jnp.sqrt(state_size)
    scale2 = 1.0 / jnp.sqrt(hidden_size)
    return {
        # Linear 1: torch weight (H, S) -> stored transposed as (S, H)
        "w1": jax.random.uniform(ks[0], (state_size, hidden_size), jnp.float32,
                                 -scale1, scale1),
        "b1": jax.random.uniform(ks[1], (1, hidden_size), jnp.float32,
                                 -scale1, scale1),
        # BatchNorm1d 1: gamma=1, beta=0 (torch default init)
        "g1": jnp.ones((1, hidden_size), jnp.float32),
        "be1": jnp.zeros((1, hidden_size), jnp.float32),
        # Linear 2
        "w2": jax.random.uniform(ks[2], (hidden_size, hidden_size), jnp.float32,
                                 -scale2, scale2),
        "b2": jax.random.uniform(ks[3], (1, hidden_size), jnp.float32,
                                 -scale2, scale2),
        # BatchNorm1d 2
        "g2": jnp.ones((1, hidden_size), jnp.float32),
        "be2": jnp.zeros((1, hidden_size), jnp.float32),
        # Linear 3: (H, 1)
        "w3": jax.random.uniform(ks[4], (hidden_size, 1), jnp.float32,
                                 -scale2, scale2),
        "b3": jax.random.uniform(ks[5], (1, 1), jnp.float32, -scale2, scale2),
    }


def _bn_train_ref(x, gamma, beta):
    mean = jnp.mean(x, axis=0, keepdims=True)
    var = jnp.mean((x - mean) * (x - mean), axis=0, keepdims=True)
    return (x - mean) * jax.lax.rsqrt(var + EPS) * gamma + beta


def reference_forward(x, p):
    """Pure-JAX reference of the ORIGINAL module math (with Linear biases)."""
    h1 = x @ p["w1"] + p["b1"]
    h1 = _leaky_relu(_bn_train_ref(h1, p["g1"], p["be1"]))
    h2 = h1 @ p["w2"] + p["b2"]
    h2 = _leaky_relu(_bn_train_ref(h2, p["g2"], p["be2"]))
    return h2 @ p["w3"] + p["b3"]


if __name__ == "__main__":
    state_size = 8     # flappy-bird style state vector
    hidden_size = 32
    batch = 8

    key = jax.random.PRNGKey(0)
    k_x, k_p = jax.random.split(key)
    x = jax.random.normal(k_x, (batch, state_size), jnp.float32)
    params = init_params(k_p, state_size, hidden_size)

    fwd = jax.jit(model_critic_forward)
    out = fwd(x, params)
    out = jax.block_until_ready(out)

    ref = reference_forward(x, params)
    assert out.shape == (batch, 1)
    assert jnp.allclose(out, ref, atol=1e-5, rtol=1e-5), "mismatch vs reference"

    print("KERNEL_OK")
</pallas_src>

<mosaic_0001>
module attributes {stable_mosaic.version = 11 : i64} {
  func.func @critic_kernel(%arg0: memref<8x8xf32, #tpu.memory_space<vmem>>, %arg1: memref<48x32xf32, #tpu.memory_space<vmem>>, %arg2: memref<8x1xf32, #tpu.memory_space<vmem>>) attributes {dimension_semantics = [], scalar_prefetch = 0 : i64, scratch_operands = 0 : i64, tpu.core_type = #tpu.core_type<tc>} {
    %c0 = arith.constant 0 : index
    %c0_0 = arith.constant 0 : index
    %0 = vector.load %arg0[%c0, %c0_0] : memref<8x8xf32, #tpu.memory_space<vmem>>, vector<8x8xf32>
    %c0_1 = arith.constant 0 : index
    %c0_2 = arith.constant 0 : index
    %1 = vector.load %arg1[%c0_1, %c0_2] : memref<48x32xf32, #tpu.memory_space<vmem>>, vector<8x32xf32>
    %cst = arith.constant dense<0.000000e+00> : vector<8x32xf32>
    %2 = tpu.matmul %0, %1, %cst {dimension_numbers = #tpu.dot_dimension_numbers<[1], [0], [0], [1], [0, 0, 1, 1], [], []>} : vector<8x8xf32>, vector<8x32xf32>, vector<8x32xf32> -> vector<8x32xf32>
    %cst_3 = arith.constant dense<0.000000e+00> : vector<32xf32>
    %3 = vector.multi_reduction <add>, %2, %cst_3 [0] : vector<8x32xf32> to vector<32xf32>
    %4 = vector.shape_cast %3 : vector<32xf32> to vector<1x32xf32>
    %cst_4 = arith.constant 1.250000e-01 : f32
    %5 = vector.broadcast %cst_4 : f32 to vector<1x32xf32>
    %6 = arith.mulf %4, %5 : vector<1x32xf32>
    %7 = arith.mulf %2, %2 : vector<8x32xf32>
    %cst_5 = arith.constant dense<0.000000e+00> : vector<32xf32>
    %8 = vector.multi_reduction <add>, %7, %cst_5 [0] : vector<8x32xf32> to vector<32xf32>
    %9 = vector.shape_cast %8 : vector<32xf32> to vector<1x32xf32>
    %cst_6 = arith.constant 1.250000e-01 : f32
    %10 = vector.broadcast %cst_6 : f32 to vector<1x32xf32>
    %11 = arith.mulf %9, %10 : vector<1x32xf32>
    %12 = arith.mulf %6, %6 : vector<1x32xf32>
    %13 = arith.subf %11, %12 : vector<1x32xf32>
    %c40 = arith.constant 40 : index
    %c0_7 = arith.constant 0 : index
    %14 = vector.load %arg1[%c40, %c0_7] : memref<48x32xf32, #tpu.memory_space<vmem>>, vector<1x32xf32>
    %cst_8 = arith.constant 9.99999974E-6 : f32
    %15 = vector.broadcast %cst_8 : f32 to vector<1x32xf32>
    %16 = arith.addf %13, %15 : vector<1x32xf32>
    %17 = math.rsqrt %16 : vector<1x32xf32>
    %18 = arith.mulf %14, %17 : vector<1x32xf32>
    %c41 = arith.constant 41 : index
    %c0_9 = arith.constant 0 : index
    %19 = vector.load %arg1[%c41, %c0_9] : memref<48x32xf32, #tpu.memory_space<vmem>>, vector<1x32xf32>
    %20 = arith.mulf %6, %18 : vector<1x32xf32>
    %21 = arith.subf %19, %20 : vector<1x32xf32>
    %22 = vector.broadcast %18 : vector<1x32xf32> to vector<8x32xf32>
    %23 = arith.mulf %2, %22 : vector<8x32xf32>
    %24 = vector.broadcast %21 : vector<1x32xf32> to vector<8x32xf32>
    %25 = arith.addf %23, %24 : vector<8x32xf32>
    %cst_10 = arith.constant 0.000000e+00 : f32
    %26 = vector.broadcast %cst_10 : f32 to vector<8x32xf32>
    %27 = arith.cmpf oge, %25, %26 : vector<8x32xf32>
    %cst_11 = arith.constant 0.00999999977 : f32
    %28 = vector.broadcast %cst_11 : f32 to vector<8x32xf32>
    %29 = arith.mulf %28, %25 : vector<8x32xf32>
    %30 = arith.select %27, %25, %29 : vector<8x32xi1>, vector<8x32xf32>
    %c8 = arith.constant 8 : index
    %c0_12 = arith.constant 0 : index
    %31 = vector.load %arg1[%c8, %c0_12] : memref<48x32xf32, #tpu.memory_space<vmem>>, vector<32x32xf32>
    %cst_13 = arith.constant dense<0.000000e+00> : vector<8x32xf32>
    %32 = tpu.matmul %30, %31, %cst_13 {dimension_numbers = #tpu.dot_dimension_numbers<[1], [0], [0], [1], [0, 0, 1, 1], [], []>} : vector<8x32xf32>, vector<32x32xf32>, vector<8x32xf32> -> vector<8x32xf32>
    %cst_14 = arith.constant dense<0.000000e+00> : vector<32xf32>
    %33 = vector.multi_reduction <add>, %32, %cst_14 [0] : vector<8x32xf32> to vector<32xf32>
    %34 = vector.shape_cast %33 : vector<32xf32> to vector<1x32xf32>
    %cst_15 = arith.constant 1.250000e-01 : f32
    %35 = vector.broadcast %cst_15 : f32 to vector<1x32xf32>
    %36 = arith.mulf %34, %35 : vector<1x32xf32>
    %37 = arith.mulf %32, %32 : vector<8x32xf32>
    %cst_16 = arith.constant dense<0.000000e+00> : vector<32xf32>
    %38 = vector.multi_reduction <add>, %37, %cst_16 [0] : vector<8x32xf32> to vector<32xf32>
    %39 = vector.shape_cast %38 : vector<32xf32> to vector<1x32xf32>
    %cst_17 = arith.constant 1.250000e-01 : f32
    %40 = vector.broadcast %cst_17 : f32 to vector<1x32xf32>
    %41 = arith.mulf %39, %40 : vector<1x32xf32>
    %42 = arith.mulf %36, %36 : vector<1x32xf32>
    %43 = arith.subf %41, %42 : vector<1x32xf32>
    %c42 = arith.constant 42 : index
    %c0_18 = arith.constant 0 : index
    %44 = vector.load %arg1[%c42, %c0_18] : memref<48x32xf32, #tpu.memory_space<vmem>>, vector<1x32xf32>
    %cst_19 = arith.constant 9.99999974E-6 : f32
    %45 = vector.broadcast %cst_19 : f32 to vector<1x32xf32>
    %46 = arith.addf %43, %45 : vector<1x32xf32>
    %47 = math.rsqrt %46 : vector<1x32xf32>
    %48 = arith.mulf %44, %47 : vector<1x32xf32>
    %c43 = arith.constant 43 : index
    %c0_20 = arith.constant 0 : index
    %49 = vector.load %arg1[%c43, %c0_20] : memref<48x32xf32, #tpu.memory_space<vmem>>, vector<1x32xf32>
    %50 = arith.mulf %36, %48 : vector<1x32xf32>
    %51 = arith.subf %49, %50 : vector<1x32xf32>
    %52 = vector.broadcast %48 : vector<1x32xf32> to vector<8x32xf32>
    %53 = arith.mulf %32, %52 : vector<8x32xf32>
    %54 = vector.broadcast %51 : vector<1x32xf32> to vector<8x32xf32>
    %55 = arith.addf %53, %54 : vector<8x32xf32>
    %cst_21 = arith.constant 0.000000e+00 : f32
    %56 = vector.broadcast %cst_21 : f32 to vector<8x32xf32>
    %57 = arith.cmpf oge, %55, %56 : vector<8x32xf32>
    %cst_22 = arith.constant 0.00999999977 : f32
    %58 = vector.broadcast %cst_22 : f32 to vector<8x32xf32>
    %59 = arith.mulf %58, %55 : vector<8x32xf32>
    %60 = arith.select %57, %55, %59 : vector<8x32xi1>, vector<8x32xf32>
    %c44 = arith.constant 44 : index
    %c0_23 = arith.constant 0 : index
    %61 = vector.load %arg1[%c44, %c0_23] : memref<48x32xf32, #tpu.memory_space<vmem>>, vector<1x32xf32>
    %62 = vector.broadcast %61 : vector<1x32xf32> to vector<8x32xf32>
    %63 = arith.mulf %60, %62 : vector<8x32xf32>
    %cst_24 = arith.constant dense<0.000000e+00> : vector<8xf32>
    %64 = vector.multi_reduction <add>, %63, %cst_24 [1] : vector<8x32xf32> to vector<8xf32>
    %65 = vector.shape_cast %64 : vector<8xf32> to vector<8x1xf32>
    %c45 = arith.constant 45 : index
    %c0_25 = arith.constant 0 : index
    %66 = vector.load %arg1[%c45, %c0_25] : memref<48x32xf32, #tpu.memory_space<vmem>>, vector<1x1xf32>
    %67 = vector.broadcast %66 : vector<1x1xf32> to vector<8x1xf32>
    %68 = arith.addf %65, %67 : vector<8x1xf32>
    %c0_26 = arith.constant 0 : index
    %c0_27 = arith.constant 0 : index
    %69 = vector.load %arg2[%c0_26, %c0_27] : memref<8x1xf32, #tpu.memory_space<vmem>>, vector<8x1xf32>
    tpu.vector_store %arg2[%c0_26, %c0_27], %68 {strides = array<i32>} : memref<8x1xf32, #tpu.memory_space<vmem>>, vector<8x1xf32>,
    return
  }
}

</mosaic_0001>

<llo_original>
// kernel: model_critic_forward.1
$region0: #{model_critic_forward.1}
  #allocation0 [shape = 'u32[]', space=smem, size = 0x4, offset = 0x4, fixed_abs, tag = 'smem constant byte address 0x4 - core index']
  #allocation1 [shape = 'u32[144,128]{1,0:T(1,128)}', space=vmem, size = 0x12000, scoped, tag = 'internal scratch']
  %s0 = inlined_call_operand.vmem [shape: f32[8,8], index: 0, kind: input, shape index: {}]
  %s1 = inlined_call_operand.vmem [shape: f32[48,32], index: 1, kind: input, shape index: {}]
  %s2 = inlined_call_operand.vmem [shape: f32[8,1], index: 2, kind: output, shape index: {}]
  %s3 = sld [smem:[#allocation0]]
  $region18: #{model_critic_forward.1} parent=0
    _
  %s5 = ssub.s32 1, %s3
  %s6 = scalar_select 0, %s5, %s3
  // Predicated region
  $region2: #{model_critic_forward.1} parent=0 // pred_check
    _
  $region3: #{model_critic_forward.1} parent=0 // pred_check_branch
    %8 = sbr.rel (0) target = $region5
  $region4: #{model_critic_forward.1} parent=0 // pred_region
    _
  $region5: #{model_critic_forward.1} parent=0 // pred_fallthru
    _
  // Predicated region
  $region6: #{model_critic_forward.1} parent=0 // pred_check
    _
  $region7: #{model_critic_forward.1} parent=0 // pred_check_branch
    %10 = sbr.rel (0) target = $region9
  $region8: #{model_critic_forward.1} parent=0 // pred_region
    _
  $region9: #{model_critic_forward.1} parent=0 // pred_fallthru
    _
  %v11 = vld [vmem:[%s0] sm:$0xff]
  %v12 = vld [vmem:[%s1] sm:$0xff]
  %vm13 = vcmask 64512
  %v15 = vsel %vm13, %v11, 0
  %17 = vmatprep.subr.mxu0 0.0
  %18 = vmatpush1.msra.mxu0 %v12
  %19 = vmatprep.subr.mxu0 0.0
  %20 = vmatpush1.msra.mxu0 0.0
  %21 = vmatprep.subr.mxu0 0.0
  %22 = vmatpush1.msra.mxu0 0.0
  %23 = vmatprep.subr.mxu0 0.0
  %24 = vmatpush1.msra.mxu0 0.0
  %25 = vmatprep.subr.mxu0 0.0
  %26 = vmatpush1.msra.mxu0 0.0
  %27 = vmatprep.subr.mxu0 0.0
  %28 = vmatpush1.msra.mxu0 0.0
  %29 = vmatprep.subr.mxu0 0.0
  %30 = vmatpush1.msra.mxu0 0.0
  %31 = vmatprep.subr.mxu0 0.0
  %32 = vmatpush1.msra.mxu0 0.0
  %33 = vmatprep.subr.mxu0 0.0
  %34 = vmatpush1.msra.mxu0 0.0
  %35 = vmatprep.subr.mxu0 0.0
  %36 = vmatpush1.msra.mxu0 0.0
  %37 = vmatprep.subr.mxu0 0.0
  %38 = vmatpush1.msra.mxu0 0.0
  %39 = vmatprep.subr.mxu0 0.0
  %40 = vmatpush1.msra.mxu0 0.0
  %41 = vmatprep.subr.mxu0 0.0
  %42 = vmatpush1.msra.mxu0 0.0
  %43 = vmatprep.subr.mxu0 0.0
  %44 = vmatpush1.msra.mxu0 0.0
  %45 = vmatprep.subr.mxu0 0.0
  %46 = vmatpush1.msra.mxu0 0.0
  %47 = vmatprep.subr.mxu0 0.0
  %48 = vmatpush1.msra.mxu0 0.0
  %49 = vmatprep.subr.mxu0 0.0
  %50 = vmatpush1.msra.mxu0 0.0
  %51 = vmatprep.subr.mxu0 0.0
  %52 = vmatpush1.msra.mxu0 0.0
  %53 = vmatprep.subr.mxu0 0.0
  %54 = vmatpush1.msra.mxu0 0.0
  %55 = vmatprep.subr.mxu0 0.0
  %56 = vmatpush1.msra.mxu0 0.0
  %57 = vmatprep.subr.mxu0 0.0
  %58 = vmatpush1.msra.mxu0 0.0
  %59 = vmatprep.subr.mxu0 0.0
  %60 = vmatpush1.msra.mxu0 0.0
  %61 = vmatprep.subr.mxu0 0.0
  %62 = vmatpush1.msra.mxu0 0.0
  %63 = vmatprep.subr.mxu0 0.0
  %64 = vmatpush1.msra.mxu0 0.0
  %65 = vmatprep.subr.mxu0 0.0
  %66 = vmatpush1.msra.mxu0 0.0
  %67 = vmatprep.subr.mxu0 0.0
  %68 = vmatpush1.msra.mxu0 0.0
  %69 = vmatprep.subr.mxu0 0.0
  %70 = vmatpush1.msra.mxu0 0.0
  %71 = vmatprep.subr.mxu0 0.0
  %72 = vmatpush1.msra.mxu0 0.0
  %73 = vmatprep.subr.mxu0 0.0
  %74 = vmatpush1.msra.mxu0 0.0
  %75 = vmatprep.subr.mxu0 0.0
  %76 = vmatpush1.msra.mxu0 0.0
  %77 = vmatprep.subr.mxu0 0.0
  %78 = vmatpush1.msra.mxu0 0.0
  %79 = vmatprep.subr.mxu0 0.0
  %80 = vmatpush1.msra.mxu0 0.0
  %81 = vmatprep.mubr.f32.mxu0 0.0
  %82 = vmatmul.mubr.f32.gmra.mrb[0].mxu0 %v15
  %v83 = vpop.f32.mrb[0].mxu0
  %v84 = vadd.f32 0.0, %v83
  %v85 = vpop.f32.mrb[0].mxu0
  %86 = vdwg.mxu0
  %vm87 = vcmask 261120
  %v88 = vsel %vm87, %v84, 0.0
  %v89 = vrot.slane %v88, 4
  %v90 = vadd.f32 %v88, %v89
  %v91 = vrot.slane %v90, 2
  %v92 = vadd.f32 %v90, %v91
  %v93 = vrot.slane %v92, 1
  %v94 = vadd.f32 %v92, %v93
  %v95 = vmul.f32 %v94, 0.125
  %v96 = vmul.f32 %v84, %v84
  %v97 = vsel %vm87, %v96, 0.0
  %v98 = vrot.slane %v97, 4
  %v99 = vadd.f32 %v97, %v98
  %v100 = vrot.slane %v99, 2
  %v101 = vadd.f32 %v99, %v100
  %v102 = vrot.slane %v101, 1
  %v103 = vadd.f32 %v101, %v102
  %v104 = vmul.f32 %v103, 0.125
  %v105 = vmul.f32 %v95, %v95
  %v106 = vsub.f32 %v104, %v105
  %v107 = vld [vmem:[%s1 + $0x28] sm:$0x1]
  %v108 = vadd.f32 %v106, 1e-05
  %v109 = vrsqrt.pop %v108
  %v110 = vmul.f32 %v107, %v109
  %v111 = vld [vmem:[%s1 + $0x29] sm:$0x1]
  %v112 = vmul.f32 %v95, %v110
  %v113 = vsub.f32 %v111, %v112
  %v114 = vlaneseq
  %v115 = vshrl.u32 %v114, 7
  %v116 = vsub.s32 0, %v115
  %v117 = vrot.slane %v110, %v116
  %v118 = vmul.f32 %v84, %v117
  %v119 = vlaneseq
  %v120 = vshrl.u32 %v119, 7
  %v121 = vsub.s32 0, %v120
  %v122 = vrot.slane %v113, %v121
  %v123 = vadd.f32 %v118, %v122
  %vm124 = vcmp.ge.f32.partialorder %v123, 0.0
  %v125 = vmul.f32 %v123, 0.01
  %v126 = vsel %vm124, %v123, %v125
  %v127 = vld [vmem:[%s1 + $0x8] sm:$0xff]
  %v128 = vld [vmem:[%s1 + $0x10] sm:$0xff]
  %v129 = vld [vmem:[%s1 + $0x18] sm:$0xff]
  %v130 = vld [vmem:[%s1 + $0x20] sm:$0xff]
  %v132 = vsel %vm87, %v126, 0
  %134 = vmatprep.subr.mxu0 0.0
  %135 = vmatpush1.msra.mxu0 %v127
  %136 = vmatprep.subr.mxu0 0.0
  %137 = vmatpush1.msra.mxu0 %v128
  %138 = vmatprep.subr.mxu0 0.0
  %139 = vmatpush1.msra.mxu0 %v129
  %140 = vmatprep.subr.mxu0 0.0
  %141 = vmatpush1.msra.mxu0 %v130
  %142 = vmatprep.subr.mxu0 0.0
  %143 = vmatpush1.msra.mxu0 0.0
  %144 = vmatprep.subr.mxu0 0.0
  %145 = vmatpush1.msra.mxu0 0.0
  %146 = vmatprep.subr.mxu0 0.0
  %147 = vmatpush1.msra.mxu0 0.0
  %148 = vmatprep.subr.mxu0 0.0
  %149 = vmatpush1.msra.mxu0 0.0
  %150 = vmatprep.subr.mxu0 0.0
  %151 = vmatpush1.msra.mxu0 0.0
  %152 = vmatprep.subr.mxu0 0.0
  %153 = vmatpush1.msra.mxu0 0.0
  %154 = vmatprep.subr.mxu0 0.0
  %155 = vmatpush1.msra.mxu0 0.0
  %156 = vmatprep.subr.mxu0 0.0
  %157 = vmatpush1.msra.mxu0 0.0
  %158 = vmatprep.subr.mxu0 0.0
  %159 = vmatpush1.msra.mxu0 0.0
  %160 = vmatprep.subr.mxu0 0.0
  %161 = vmatpush1.msra.mxu0 0.0
  %162 = vmatprep.subr.mxu0 0.0
  %163 = vmatpush1.msra.mxu0 0.0
  %164 = vmatprep.subr.mxu0 0.0
  %165 = vmatpush1.msra.mxu0 0.0
  %166 = vmatprep.subr.mxu0 0.0
  %167 = vmatpush1.msra.mxu0 0.0
  %168 = vmatprep.subr.mxu0 0.0
  %169 = vmatpush1.msra.mxu0 0.0
  %170 = vmatprep.subr.mxu0 0.0
  %171 = vmatpush1.msra.mxu0 0.0
  %172 = vmatprep.subr.mxu0 0.0
  %173 = vmatpush1.msra.mxu0 0.0
  %174 = vmatprep.subr.mxu0 0.0
  %175 = vmatpush1.msra.mxu0 0.0
  %176 = vmatprep.subr.mxu0 0.0
  %177 = vmatpush1.msra.mxu0 0.0
  %178 = vmatprep.subr.mxu0 0.0
  %179 = vmatpush1.msra.mxu0 0.0
  %180 = vmatprep.subr.mxu0 0.0
  %181 = vmatpush1.msra.mxu0 0.0
  %182 = vmatprep.subr.mxu0 0.0
  %183 = vmatpush1.msra.mxu0 0.0
  %184 = vmatprep.subr.mxu0 0.0
  %185 = vmatpush1.msra.mxu0 0.0
  %186 = vmatprep.subr.mxu0 0.0
  %187 = vmatpush1.msra.mxu0 0.0
  %188 = vmatprep.subr.mxu0 0.0
  %189 = vmatpush1.msra.mxu0 0.0
  %190 = vmatprep.subr.mxu0 0.0
  %191 = vmatpush1.msra.mxu0 0.0
  %192 = vmatprep.subr.mxu0 0.0
  %193 = vmatpush1.msra.mxu0 0.0
  %194 = vmatprep.subr.mxu0 0.0
  %195 = vmatpush1.msra.mxu0 0.0
  %196 = vmatprep.subr.mxu0 0.0
  %197 = vmatpush1.msra.mxu0 0.0
  %198 = vmatprep.mubr.f32.mxu0 0.0
  %199 = vmatmul.mubr.f32.gmra.mrb[0].mxu0 %v132
  %v200 = vpop.f32.mrb[0].mxu0
  %v201 = vadd.f32 0.0, %v200
  %v202 = vpop.f32.mrb[0].mxu0
  %203 = vdwg.mxu0
  %v204 = vsel %vm87, %v201, 0.0
  %v205 = vrot.slane %v204, 4
  %v206 = vadd.f32 %v204, %v205
  %v207 = vrot.slane %v206, 2
  %v208 = vadd.f32 %v206, %v207
  %v209 = vrot.slane %v208, 1
  %v210 = vadd.f32 %v208, %v209
  %v211 = vmul.f32 %v210, 0.125
  %v212 = vmul.f32 %v201, %v201
  %v213 = vsel %vm87, %v212, 0.0
  %v214 = vrot.slane %v213, 4
  %v215 = vadd.f32 %v213, %v214
  %v216 = vrot.slane %v215, 2
  %v217 = vadd.f32 %v215, %v216
  %v218 = vrot.slane %v217, 1
  %v219 = vadd.f32 %v217, %v218
  %v220 = vmul.f32 %v219, 0.125
  %v221 = vmul.f32 %v211, %v211
  %v222 = vsub.f32 %v220, %v221
  %v223 = vld [vmem:[%s1 + $0x2a] sm:$0x1]
  %v224 = vadd.f32 %v222, 1e-05
  %v225 = vrsqrt.pop %v224
  %v226 = vmul.f32 %v223, %v225
  %v227 = vld [vmem:[%s1 + $0x2b] sm:$0x1]
  %v228 = vmul.f32 %v211, %v226
  %v229 = vsub.f32 %v227, %v228
  %v230 = vlaneseq
  %v231 = vshrl.u32 %v230, 7
  %v232 = vsub.s32 0, %v231
  %v233 = vrot.slane %v226, %v232
  %v234 = vmul.f32 %v201, %v233
  %v235 = vlaneseq
  %v236 = vshrl.u32 %v235, 7
  %v237 = vsub.s32 0, %v236
  %v238 = vrot.slane %v229, %v237
  %v239 = vadd.f32 %v234, %v238
  %vm240 = vcmp.ge.f32.partialorder %v239, 0.0
  %v241 = vmul.f32 %v239, 0.01
  %v242 = vsel %vm240, %v239, %v241
  %v243 = vld [vmem:[%s1 + $0x2c] sm:$0x1]
  %v244 = vlaneseq
  %v245 = vshrl.u32 %v244, 7
  %v246 = vsub.s32 0, %v245
  %v247 = vrot.slane %v243, %v246
  %v248 = vmul.f32 %v242, %v247
  %v249 = vsel %vm87, %v248, 0.0
  %250 = vadd.xlane.f32.xlu0 %v249
  %v251 = vpop.xlane.xlu0 %250
  %v252 = vld [vmem:[%s1 + $0x2d] sm:$0x1]
  %v253 = vlaneseq
  %v254 = vshrl.u32 %v253, 7
  %v255 = vsub.s32 0, %v254
  %v256 = vrot.slane %v252, %v255
  %v257 = vadd.f32 %v251, %v256
  %vm258 = vcmask 7168
  %259 = vst.msk [vmem:[%s2] sm:$0xff] %vm258, %v257
  // Predicated region
  $region10: #{model_critic_forward.1} parent=0 // pred_check
    _
  $region11: #{model_critic_forward.1} parent=0 // pred_check_branch
    %261 = sbr.rel (0) target = $region13
  $region12: #{model_critic_forward.1} parent=0 // pred_region
    _
  $region13: #{model_critic_forward.1} parent=0 // pred_fallthru
    _
  // Predicated region
  $region14: #{model_critic_forward.1} parent=0 // pred_check
    _
  $region15: #{model_critic_forward.1} parent=0 // pred_check_branch
    %263 = sbr.rel (0) target = $region17
  $region16: #{model_critic_forward.1} parent=0 // pred_region
    _
  $region17: #{model_critic_forward.1} parent=0 // pred_fallthru
    _

</llo_original>
